<compile_context>
chip_gen: v6e
topology: v6e:2x2x1
jax: 0.10.0
libtpu: 0.0.40
codegen_flags: <defaults>
</compile_context>

<pallas_src>
import jax
import jax.numpy as jnp
from jax.experimental import pallas as pl
from jax.experimental.pallas import tpu as pltpu


def _round_up(x, m):
    return ((x + m - 1) // m) * m


def linear_packed_kernel(x_ref, w_ref, b_ref, o_ref):
    # x_ref: (TB, Dp) VMEM  -- `pack` logical rows folded into each 128-lane line
    # w_ref: (Dp, pack) VMEM -- block-diagonal weight (w repeated on the diagonal)
    # b_ref: (1,) SMEM       -- bias scalar
    # o_ref: (TB, pack) VMEM -- y for the pack logical rows of each packed row
    y = jnp.dot(x_ref[...], w_ref[...], preferred_element_type=jnp.float32)
    o_ref[...] = (y + b_ref[0]).astype(o_ref.dtype)


def linear_pallas(x, weight, bias, *, vmem_budget_bytes=16 * 1024 * 1024):
    """nn.Linear(d, 1) forward.  x: (B, D), weight: (1, D), bias: (1,)  ->  (B, 1)."""
    B, D = x.shape
    dt = x.dtype

    # ---- lane packing: fold `pack` logical rows into one 128-lane line ----
    pack = 128 // D if (D <= 128 and 128 % D == 0) else 1
    Dp = D * pack

    Bp = _round_up(B, pack)
    if Bp != B:
        x = jnp.pad(x, ((0, Bp - B), (0, 0)))
    rp = Bp // pack                          # packed rows
    x_packed = x.reshape(rp, Dp)             # zero-copy row-major repack

    # Block-diagonal weight: W_packed[g*D + d, g] = w[d]  (pack==1 -> plain (D, 1))
    w_col = weight.reshape(D, 1).astype(dt)
    if pack > 1:
        w_packed = jnp.kron(jnp.eye(pack, dtype=dt), w_col)   # (Dp, pack)
    else:
        w_packed = w_col

    smem_bias_spec = pl.BlockSpec(memory_space=pltpu.MemorySpace.SMEM)

    # ---- tile size from a VMEM byte budget ----
    # Per packed row: double-buffered input line + double-buffered output block
    # (the (tb, pack) output buffer is lane-padded to 128 in VMEM).
    in_row_bytes = _round_up(Dp, 128) * 4
    out_row_bytes = 128 * 4
    per_row = 2 * (in_row_bytes + out_row_bytes)
    tb = max(8, (vmem_budget_bytes // per_row) // 8 * 8)

    if rp <= tb:
        # Small batch: single DMA in / compute / DMA out, no grid machinery.
        out = pl.pallas_call(
            linear_packed_kernel,
            out_shape=jax.ShapeDtypeStruct((rp, pack), dt),
            in_specs=[
                pl.BlockSpec(memory_space=pltpu.MemorySpace.VMEM),  # x_packed
                pl.BlockSpec(memory_space=pltpu.MemorySpace.VMEM),  # w_packed
                smem_bias_spec,                                     # bias scalar
            ],
            out_specs=pl.BlockSpec(memory_space=pltpu.MemorySpace.VMEM),
        )(x_packed, w_packed, bias)
    else:
        # Large batch: balanced cdiv grid over packed rows, padded tail tile,
        # batch axis "parallel" (>=2 steps so both v7x TensorCores get work).
        n_steps = pl.cdiv(rp, tb)                       # >= 2 here
        tb = _round_up(pl.cdiv(rp, n_steps), 8)         # rebalance, stays <= budget tb
        rp_pad = n_steps * tb
        if rp_pad != rp:
            x_packed = jnp.pad(x_packed, ((0, rp_pad - rp), (0, 0)))
        out = pl.pallas_call(
            linear_packed_kernel,
            out_shape=jax.ShapeDtypeStruct((rp_pad, pack), dt),
            grid=(n_steps,),
            in_specs=[
                pl.BlockSpec((tb, Dp), lambda i: (i, 0)),      # stream packed rows
                pl.BlockSpec((Dp, pack), lambda i: (0, 0)),    # grid-invariant weight
                smem_bias_spec,                                # grid-invariant bias
            ],
            out_specs=pl.BlockSpec((tb, pack), lambda i: (i, 0)),
            compiler_params=pltpu.CompilerParams(
                dimension_semantics=("parallel",),
            ),
        )(x_packed, w_packed, bias)
        out = out[:rp]

    # (rp, pack) row-major == logical batch order -> (B, 1)
    return out.reshape(Bp, 1)[:B]


if __name__ == "__main__":
    d = 32
    batch = 8

    key = jax.random.PRNGKey(0)
    kx, kw, kb, kx2 = jax.random.split(key, 4)

    # Deterministic parameters mimicking nn.Linear(d, 1):
    # weight (1, d), bias (1,), both uniform(-1/sqrt(d), 1/sqrt(d)).
    bound = 1.0 / jnp.sqrt(jnp.float32(d))
    weight = jax.random.uniform(kw, (1, d), jnp.float32, -bound, bound)
    bias = jax.random.uniform(kb, (1,), jnp.float32, -bound, bound)

    # --- Small-batch path (the module's natural test shape). ---
    x = jax.random.normal(kx, (batch, d), jnp.float32)
    out = linear_pallas(x, weight, bias)
    jax.block_until_ready(out)
    ref = x @ weight.T + bias
    assert out.shape == (batch, 1)
    assert jnp.allclose(out, ref, atol=1e-4, rtol=1e-4)

    # --- Gridded path sanity check: small VMEM budget forces the tiled path,
    #     odd B exercises both the pack padding and the tail-tile padding. ---
    b_big = 4101
    x_big = jax.random.normal(kx2, (b_big, d), jnp.float32)
    out_big = linear_pallas(x_big, weight, bias, vmem_budget_bytes=1 << 20)
    jax.block_until_ready(out_big)
    ref_big = x_big @ weight.T + bias
    assert out_big.shape == (b_big, 1)
    assert jnp.allclose(out_big, ref_big, atol=1e-4, rtol=1e-4)

    print("KERNEL_OK")
</pallas_src>

<mosaic_0001>
module attributes {stable_mosaic.version = 11 : i64} {
  func.func @linear_packed_kernel(%arg0: memref<2x128xf32, #tpu.memory_space<vmem>>, %arg1: memref<128x4xf32, #tpu.memory_space<vmem>>, %arg2: memref<1xf32, #tpu.memory_space<smem>>, %arg3: memref<2x4xf32, #tpu.memory_space<vmem>>) attributes {dimension_semantics = [], scalar_prefetch = 0 : i64, scratch_operands = 0 : i64, tpu.core_type = #tpu.core_type<tc>} {
    %c0 = arith.constant 0 : index
    %c0_0 = arith.constant 0 : index
    %0 = vector.load %arg0[%c0, %c0_0] : memref<2x128xf32, #tpu.memory_space<vmem>>, vector<2x128xf32>
    %c0_1 = arith.constant 0 : index
    %c0_2 = arith.constant 0 : index
    %1 = vector.load %arg1[%c0_1, %c0_2] : memref<128x4xf32, #tpu.memory_space<vmem>>, vector<128x4xf32>
    %cst = arith.constant dense<0.000000e+00> : vector<2x4xf32>
    %2 = tpu.matmul %0, %1, %cst {dimension_numbers = #tpu.dot_dimension_numbers<[1], [0], [0], [1], [0, 0, 1, 1], [], []>} : vector<2x128xf32>, vector<128x4xf32>, vector<2x4xf32> -> vector<2x4xf32>
    %c0_3 = arith.constant 0 : index
    %3 = memref.load %arg2[%c0_3] : memref<1xf32, #tpu.memory_space<smem>>
    %4 = vector.broadcast %3 : f32 to vector<2x4xf32>
    %5 = arith.addf %2, %4 : vector<2x4xf32>
    %c0_4 = arith.constant 0 : index
    %c0_5 = arith.constant 0 : index
    %6 = vector.load %arg3[%c0_4, %c0_5] : memref<2x4xf32, #tpu.memory_space<vmem>>, vector<2x4xf32>
    tpu.vector_store %arg3[%c0_4, %c0_5], %5 {strides = array<i32>} : memref<2x4xf32, #tpu.memory_space<vmem>>, vector<2x4xf32>,
    return
  }
}

</mosaic_0001>

<llo_original>
// kernel: tpu_custom_call.1
$region0: #{tpu_custom_call.1}
  #allocation0 [shape = 'u32[]', space=smem, size = 0x4, offset = 0x4, fixed_abs, tag = 'smem constant byte address 0x4 - core index']
  #allocation1 [shape = 'u32[144,128]{1,0:T(1,128)}', space=vmem, size = 0x12000, scoped, tag = 'internal scratch']
  #allocation2 [shape = 'f32[1]{0:T(128)S(6)}', space=smem, size = 0x200, scoped, tag = 'scoped memory for tpu_custom_call.1']
  %s0 = inlined_call_operand.vmem [shape: f32[2,128], index: 0, kind: input, shape index: {}]
  %s1 = inlined_call_operand.vmem [shape: f32[128,4], index: 1, kind: input, shape index: {}]
  %s2 = inlined_call_operand.<no memory space> [shape: f32[1], index: 2, kind: input, shape index: {}]
  %s3 = inlined_call_operand.hbm [shape: f32[2,4], index: 3, kind: output, shape index: {}]
  %s4 = sld [smem:[#allocation0]]
  $region22: #{tpu_custom_call.1} parent=0
    _
  %s6 = ssub.s32 1, %s4
  %s7 = scalar_select 0, %s6, %s4
  %8 = sst [smem:[#allocation2]] %s2
  $region1: #{tpu_custom_call.1} parent=0
    #allocation3 [shape = 'u8[1024]{0}', space=vmem, size = 0x400, scoped, tag = 'output window, operand 0, single buffered']
    #allocation4 [shape = 's32[1]{0}', space=sflag, size = 0x4, scoped, tag = 'scoped memory for tpu_custom_call.1']
    %9 = vsyncpa [#allocation4], 0
    // Predicated region
    $region2: #{tpu_custom_call.1} parent=1 // pred_check
      _
    $region3: #{tpu_custom_call.1} parent=1 // pred_check_branch
      %11 = sbr.rel (0) target = $region5
    $region4: #{tpu_custom_call.1} parent=1 // pred_region
      _
    $region5: #{tpu_custom_call.1} parent=1 // pred_fallthru
      _
    // Predicated region
    $region6: #{tpu_custom_call.1} parent=1 // pred_check
      _
    $region7: #{tpu_custom_call.1} parent=1 // pred_check_branch
      %13 = sbr.rel (0) target = $region9
    $region8: #{tpu_custom_call.1} parent=1 // pred_region
      _
    $region9: #{tpu_custom_call.1} parent=1 // pred_fallthru
      _
    // Predicated region
    $region10: #{tpu_custom_call.1} parent=1 // pred_check
      _
    $region11: #{tpu_custom_call.1} parent=1 // pred_check_branch
      %15 = sbr.rel (0) target = $region13
    $region12: #{tpu_custom_call.1} parent=1 // pred_region
      _
    $region13: #{tpu_custom_call.1} parent=1 // pred_fallthru
      _
    %v16 = vld [vmem:[%s0] sm:$0x3]
    %v17 = vld [vmem:[%s1] sm:$0xff]
    %v18 = vld [vmem:[%s1 + $0x8] sm:$0xff]
    %v19 = vld [vmem:[%s1 + $0x10] sm:$0xff]
    %v20 = vld [vmem:[%s1 + $0x18] sm:$0xff]
    %v21 = vld [vmem:[%s1 + $0x20] sm:$0xff]
    %v22 = vld [vmem:[%s1 + $0x28] sm:$0xff]
    %v23 = vld [vmem:[%s1 + $0x30] sm:$0xff]
    %v24 = vld [vmem:[%s1 + $0x38] sm:$0xff]
    %v25 = vld [vmem:[%s1 + $0x40] sm:$0xff]
    %v26 = vld [vmem:[%s1 + $0x48] sm:$0xff]
    %v27 = vld [vmem:[%s1 + $0x50] sm:$0xff]
    %v28 = vld [vmem:[%s1 + $0x58] sm:$0xff]
    %v29 = vld [vmem:[%s1 + $0x60] sm:$0xff]
    %v30 = vld [vmem:[%s1 + $0x68] sm:$0xff]
    %v31 = vld [vmem:[%s1 + $0x70] sm:$0xff]
    %v32 = vld [vmem:[%s1 + $0x78] sm:$0xff]
    %s33 = sld [smem:[#allocation2]]
    %v34 = vstv %s33
    %35 = vmatprep.subr.mxu0 0.0
    %36 = vmatpush1.msra.mxu0 %v32
    %37 = vmatprep.subr.mxu0 0.0
    %38 = vmatpush1.msra.mxu0 %v31
    %39 = vmatprep.subr.mxu0 0.0
    %40 = vmatpush1.msra.mxu0 %v30
    %41 = vmatprep.subr.mxu0 0.0
    %42 = vmatpush1.msra.mxu0 %v29
    %43 = vmatprep.subr.mxu0 0.0
    %44 = vmatpush1.msra.mxu0 %v28
    %45 = vmatprep.subr.mxu0 0.0
    %46 = vmatpush1.msra.mxu0 %v27
    %47 = vmatprep.subr.mxu0 0.0
    %48 = vmatpush1.msra.mxu0 %v26
    %49 = vmatprep.subr.mxu0 0.0
    %50 = vmatpush1.msra.mxu0 %v25
    %51 = vmatprep.subr.mxu0 0.0
    %52 = vmatpush1.msra.mxu0 %v24
    %53 = vmatprep.subr.mxu0 0.0
    %54 = vmatpush1.msra.mxu0 %v23
    %55 = vmatprep.subr.mxu0 0.0
    %56 = vmatpush1.msra.mxu0 %v22
    %57 = vmatprep.subr.mxu0 0.0
    %58 = vmatpush1.msra.mxu0 %v21
    %59 = vmatprep.subr.mxu0 0.0
    %60 = vmatpush1.msra.mxu0 %v20
    %61 = vmatprep.subr.mxu0 0.0
    %62 = vmatpush1.msra.mxu0 %v19
    %63 = vmatprep.subr.mxu0 0.0
    %64 = vmatpush1.msra.mxu0 %v18
    %65 = vmatprep.subr.mxu0 0.0
    %66 = vmatpush1.msra.mxu0 %v17
    %67 = vmatprep.subr.mxu0 0.0
    %68 = vmatpush2.msra.mxu0 0.0
    %69 = vmatprep.subr.mxu0 0.0
    %70 = vmatpush2.msra.mxu0 0.0
    %71 = vmatprep.subr.mxu0 0.0
    %72 = vmatpush2.msra.mxu0 0.0
    %73 = vmatprep.subr.mxu0 0.0
    %74 = vmatpush2.msra.mxu0 0.0
    %75 = vmatprep.subr.mxu0 0.0
    %76 = vmatpush2.msra.mxu0 0.0
    %77 = vmatprep.subr.mxu0 0.0
    %78 = vmatpush2.msra.mxu0 0.0
    %79 = vmatprep.subr.mxu0 0.0
    %80 = vmatpush2.msra.mxu0 0.0
    %81 = vmatprep.subr.mxu0 0.0
    %82 = vmatpush2.msra.mxu0 0.0
    %83 = vmatprep.subr.mxu0 0.0
    %84 = vmatpush2.msra.mxu0 0.0
    %85 = vmatprep.subr.mxu0 0.0
    %86 = vmatpush2.msra.mxu0 0.0
    %87 = vmatprep.subr.mxu0 0.0
    %88 = vmatpush2.msra.mxu0 0.0
    %89 = vmatprep.subr.mxu0 0.0
    %90 = vmatpush2.msra.mxu0 0.0
    %91 = vmatprep.subr.mxu0 0.0
    %92 = vmatpush2.msra.mxu0 0.0
    %93 = vmatprep.subr.mxu0 0.0
    %94 = vmatpush2.msra.mxu0 0.0
    %95 = vmatprep.subr.mxu0 0.0
    %96 = vmatpush2.msra.mxu0 0.0
    %97 = vmatprep.subr.mxu0 0.0
    %98 = vmatpush2.msra.mxu0 0.0
    %99 = vmatprep.mubr.f32.mxu0 0.0
    %100 = vmatmul.mubr.f32.gmra.mxu0 %v16
    %v101 = vpop.f32.mrf.mxu0
    %v102 = vadd.f32 %v34, %v101
    %v103 = vpop.f32.mrf.mxu0
    %104 = vdwg.mxu0
    %vm105 = vcmask 25600
    %106 = vst.msk [vmem:[#allocation3] sm:$0x3] %vm105, %v102
    // Predicated region
    $region14: #{tpu_custom_call.1} parent=1 // pred_check
      _
    $region15: #{tpu_custom_call.1} parent=1 // pred_check_branch
      %108 = sbr.rel (0) target = $region17
    $region16: #{tpu_custom_call.1} parent=1 // pred_region
      %s110 = ssub.s32 32, 32
      %111 = vsyncadd [#allocation4], %s110
      %s113 = sshll.u32 [#allocation3], 4
      %s114 = int_to_ptr.vmem [resolvable:$true] %s113
      %116 = dma.vmem_to_hbm [thread:$0]  %s114, 32, %s3, [#allocation4]
    $region17: #{tpu_custom_call.1} parent=1 // pred_fallthru
      _
    // Predicated region
    $region18: #{tpu_custom_call.1} parent=1 // pred_check
      _
    $region19: #{tpu_custom_call.1} parent=1 // pred_check_branch
      %118 = sbr.rel (0) target = $region21
    $region20: #{tpu_custom_call.1} parent=1 // pred_region
      %119 = dma.done [#allocation4], 32
    $region21: #{tpu_custom_call.1} parent=1 // pred_fallthru
      _
    %120 = vsyncpa [#allocation4], 1

</llo_original>
